<compile_context>
chip_gen: v7x
topology: tpu7x:2x2x1
jax: 0.10.0
libtpu: 0.0.40
codegen_flags: <defaults>
</compile_context>

<pallas_src>
import functools

import jax
import jax.numpy as jnp
from jax.experimental import pallas as pl
from jax.experimental.pallas import tpu as pltpu


def _mlp_kernel(x_ref, w1_ref, b1_ref, w2_ref, b2_ref,
                w3_ref, b3_ref, w4_ref, b4_ref, o_ref):
    # x_ref: (tile, M) f32.  w1/w2/w3: bf16 (in, out).  b1/b2/b3: (1,128) f32.
    # w4_ref: (1,128) f32 (lane-dense row).  b4_ref: (1,1) f32 in SMEM.
    x = x_ref[...].astype(jnp.bfloat16)                              # cast in-kernel
    h = jnp.dot(x, w1_ref[...], preferred_element_type=jnp.float32)
    h = jnp.maximum(h + b1_ref[...], 0.0)                            # f32 VPU
    h = jnp.dot(h.astype(jnp.bfloat16), w2_ref[...],
                preferred_element_type=jnp.float32)
    h = jnp.maximum(h + b2_ref[...], 0.0)
    h = jnp.dot(h.astype(jnp.bfloat16), w3_ref[...],
                preferred_element_type=jnp.float32)
    h = jnp.maximum(h + b3_ref[...], 0.0)
    # fc4 (128 -> 1): VPU multiply + XLU lane reduction.
    o = jnp.sum(h * w4_ref[...], axis=-1, keepdims=True) + b4_ref[0, 0]
    o_ref[...] = o.astype(o_ref.dtype)


@functools.partial(jax.jit, static_argnames=("tile_rows",))
def mlp_forward(x, params, *, tile_rows=4096):
    """x: (..., M) float32.  Returns (..., 1) float32."""
    w1, b1, w2, b2, w3, b3, w4, b4 = params
    M = x.shape[-1]
    H = w2.shape[0]                       # 128
    lead = x.shape[:-1]
    x2 = x.reshape(-1, M).astype(jnp.float32)
    rows = x2.shape[0]

    # Row tile: big enough to amortize per-grid-step overhead, small enough
    # that 2x (tile, M) f32 x buffers + a few (tile, 128) f32 intermediates
    # stay well under the 32 MiB scoped VMEM default (v7x: 64 MiB physical).
    max_x_tile_bytes = 4 * 1024 * 1024            # per x buffer, f32
    cap = max(8, (max_x_tile_bytes // (M * 4)) // 8 * 8)
    tile = max(8, min(tile_rows, cap) // 8 * 8)   # multiple of 8 rows
    if rows <= tile:
        tile = rows                               # single full block
    grid = (pl.cdiv(rows, tile),)                 # partial last block allowed

    # Weights resident in VMEM across the grid; matmul weights bf16, biases f32.
    w1b = w1.astype(jnp.bfloat16)                 # (M, H)
    w2b = w2.astype(jnp.bfloat16)                 # (H, H)
    w3b = w3.astype(jnp.bfloat16)                 # (H, H)
    w4r = w4.reshape(1, H).astype(jnp.float32)    # lane-dense row for VPU path
    b1f = b1.reshape(1, H).astype(jnp.float32)
    b2f = b2.reshape(1, H).astype(jnp.float32)
    b3f = b3.reshape(1, H).astype(jnp.float32)
    b4s = b4.reshape(1, 1).astype(jnp.float32)    # scalar -> SMEM

    def const_spec(shape):
        # Full (untiled) block, resident across all grid steps.
        return pl.BlockSpec(shape, lambda i: (0, 0))

    flops = 2 * rows * (M * H + 2 * H * H + H)
    bytes_accessed = (rows * M * 4 + rows * 4
                      + (M * H + 2 * H * H) * 2 + (4 * H + 1) * 4)

    out = pl.pallas_call(
        _mlp_kernel,
        out_shape=jax.ShapeDtypeStruct((rows, 1), jnp.float32),
        grid_spec=pltpu.PrefetchScalarGridSpec(
            num_scalar_prefetch=0,
            grid=grid,
            in_specs=[
                pl.BlockSpec((tile, M), lambda i: (i, 0)),          # x tile (f32)
                const_spec(w1b.shape), const_spec(b1f.shape),
                const_spec(w2b.shape), const_spec(b2f.shape),
                const_spec(w3b.shape), const_spec(b3f.shape),
                const_spec(w4r.shape),
                pl.BlockSpec(memory_space=pltpu.MemorySpace.SMEM),  # b4 scalar
            ],
            out_specs=pl.BlockSpec((tile, 1), lambda i: (i, 0)),
        ),
        compiler_params=pltpu.CompilerParams(
            dimension_semantics=("parallel",)),
        cost_estimate=pl.CostEstimate(flops=flops, transcendentals=0,
                                      bytes_accessed=bytes_accessed),
    )(x2, w1b, b1f, w2b, b2f, w3b, b3f, w4r, b4s)

    return out.reshape(*lead, 1)


def init_params(key, M, hidden=128):
    """Deterministic init matching the nn.Linear shapes (stored as (in, out))."""
    ks = jax.random.split(key, 8)

    def linear(kw, kb, fan_in, fan_out):
        bound = 1.0 / jnp.sqrt(fan_in)
        w = jax.random.uniform(kw, (fan_in, fan_out), jnp.float32, -bound, bound)
        b = jax.random.uniform(kb, (1, fan_out), jnp.float32, -bound, bound)
        return w, b

    w1, b1 = linear(ks[0], ks[1], M, hidden)
    w2, b2 = linear(ks[2], ks[3], hidden, hidden)
    w3, b3 = linear(ks[4], ks[5], hidden, hidden)
    w4, b4 = linear(ks[6], ks[7], hidden, 1)
    return (w1, b1, w2, b2, w3, b3, w4, b4)


def mlp_reference(x, params):
    """Pure-JAX reference mirroring the kernel's bf16-operand / f32-accum math."""
    w1, b1, w2, b2, w3, b3, w4, b4 = params
    bf = jnp.bfloat16
    h = jnp.dot(x.astype(bf), w1.astype(bf), preferred_element_type=jnp.float32)
    h = jnp.maximum(h + b1[0], 0.0)
    h = jnp.dot(h.astype(bf), w2.astype(bf), preferred_element_type=jnp.float32)
    h = jnp.maximum(h + b2[0], 0.0)
    h = jnp.dot(h.astype(bf), w3.astype(bf), preferred_element_type=jnp.float32)
    h = jnp.maximum(h + b3[0], 0.0)
    return jnp.sum(h * w4[:, 0], axis=-1, keepdims=True) + b4[0]


if __name__ == "__main__":
    key = jax.random.PRNGKey(0)
    k_x, k_x2, k_p = jax.random.split(key, 3)

    # train_x.npy is (num_samples, seq, M); the Linear broadcasts over leading
    # axes.  Small synthetic shape: batch=2, seq=8, M=32.
    B, N, M = 2, 8, 32
    x = jax.random.normal(k_x, (B, N, M), dtype=jnp.float32)
    params = init_params(k_p, M)

    y = jax.block_until_ready(mlp_forward(x, params))
    y_ref = mlp_reference(x, params)
    assert y.shape == (B, N, 1), y.shape
    err = float(jnp.max(jnp.abs(y - y_ref)))
    assert err < 1e-3, err

    # Exercise the multi-step grid + partial-last-block path at a small size.
    xb = jax.random.normal(k_x2, (200, M), dtype=jnp.float32)
    yb = jax.block_until_ready(mlp_forward(xb, params, tile_rows=64))
    yb_ref = mlp_reference(xb, params)
    assert yb.shape == (200, 1), yb.shape
    errb = float(jnp.max(jnp.abs(yb - yb_ref)))
    assert errb < 1e-3, errb

    print("KERNEL_OK")
</pallas_src>

<mosaic_0001>
module attributes {stable_mosaic.version = 11 : i64} {
  func.func @_mlp_kernel(%arg0: i32, %arg1: memref<16x32xf32, #tpu.memory_space<vmem>>, %arg2: memref<32x128xbf16, #tpu.memory_space<vmem>>, %arg3: memref<1x128xf32, #tpu.memory_space<vmem>>, %arg4: memref<128x128xbf16, #tpu.memory_space<vmem>>, %arg5: memref<1x128xf32, #tpu.memory_space<vmem>>, %arg6: memref<128x128xbf16, #tpu.memory_space<vmem>>, %arg7: memref<1x128xf32, #tpu.memory_space<vmem>>, %arg8: memref<1x128xf32, #tpu.memory_space<vmem>>, %arg9: memref<1x1xf32, #tpu.memory_space<smem>>, %arg10: memref<16x1xf32, #tpu.memory_space<vmem>>) attributes {dimension_semantics = [#tpu.dimension_semantics<parallel>], iteration_bounds = array<i64: 1>, scalar_prefetch = 0 : i64, scratch_operands = 0 : i64, tpu.core_type = #tpu.core_type<tc>, window_params = [{transform_indices = @transform_0, window_bounds = array<i64: 16, 32>}, {pipeline_mode = #tpu.pipeline_mode<synchronous>, transform_indices = @transform_1, window_bounds = array<i64: 32, 128>}, {pipeline_mode = #tpu.pipeline_mode<synchronous>, transform_indices = @transform_2, window_bounds = array<i64: 1, 128>}, {pipeline_mode = #tpu.pipeline_mode<synchronous>, transform_indices = @transform_3, window_bounds = array<i64: 128, 128>}, {pipeline_mode = #tpu.pipeline_mode<synchronous>, transform_indices = @transform_4, window_bounds = array<i64: 1, 128>}, {pipeline_mode = #tpu.pipeline_mode<synchronous>, transform_indices = @transform_5, window_bounds = array<i64: 128, 128>}, {pipeline_mode = #tpu.pipeline_mode<synchronous>, transform_indices = @transform_6, window_bounds = array<i64: 1, 128>}, {pipeline_mode = #tpu.pipeline_mode<synchronous>, transform_indices = @transform_7, window_bounds = array<i64: 1, 128>}, {transform_indices = @transform_8, window_bounds = array<i64: 1, 1>}, {transform_indices = @transform_9, window_bounds = array<i64: 16, 1>}]} {
    %c0 = arith.constant 0 : index
    %c0_0 = arith.constant 0 : index
    %0 = vector.load %arg1[%c0, %c0_0] : memref<16x32xf32, #tpu.memory_space<vmem>>, vector<16x32xf32>
    %1 = arith.truncf %0 : vector<16x32xf32> to vector<16x32xbf16>
    %c0_1 = arith.constant 0 : index
    %c0_2 = arith.constant 0 : index
    %2 = vector.load %arg2[%c0_1, %c0_2] : memref<32x128xbf16, #tpu.memory_space<vmem>>, vector<32x128xbf16>
    %cst = arith.constant dense<0.000000e+00> : vector<16x128xf32>
    %3 = tpu.matmul %1, %2, %cst {dimension_numbers = #tpu.dot_dimension_numbers<[1], [0], [0], [1], [0, 0, 1, 1], [], []>} : vector<16x32xbf16>, vector<32x128xbf16>, vector<16x128xf32> -> vector<16x128xf32>
    %c0_3 = arith.constant 0 : index
    %c0_4 = arith.constant 0 : index
    %4 = vector.load %arg3[%c0_3, %c0_4] : memref<1x128xf32, #tpu.memory_space<vmem>>, vector<1x128xf32>
    %5 = vector.broadcast %4 : vector<1x128xf32> to vector<16x128xf32>
    %6 = arith.addf %3, %5 : vector<16x128xf32>
    %cst_5 = arith.constant 0.000000e+00 : f32
    %7 = vector.broadcast %cst_5 : f32 to vector<16x128xf32>
    %8 = arith.maximumf %6, %7 : vector<16x128xf32>
    %9 = arith.truncf %8 : vector<16x128xf32> to vector<16x128xbf16>
    %c0_6 = arith.constant 0 : index
    %c0_7 = arith.constant 0 : index
    %10 = vector.load %arg4[%c0_6, %c0_7] : memref<128x128xbf16, #tpu.memory_space<vmem>>, vector<128x128xbf16>
    %cst_8 = arith.constant dense<0.000000e+00> : vector<16x128xf32>
    %11 = tpu.matmul %9, %10, %cst_8 {dimension_numbers = #tpu.dot_dimension_numbers<[1], [0], [0], [1], [0, 0, 1, 1], [], []>} : vector<16x128xbf16>, vector<128x128xbf16>, vector<16x128xf32> -> vector<16x128xf32>
    %c0_9 = arith.constant 0 : index
    %c0_10 = arith.constant 0 : index
    %12 = vector.load %arg5[%c0_9, %c0_10] : memref<1x128xf32, #tpu.memory_space<vmem>>, vector<1x128xf32>
    %13 = vector.broadcast %12 : vector<1x128xf32> to vector<16x128xf32>
    %14 = arith.addf %11, %13 : vector<16x128xf32>
    %cst_11 = arith.constant 0.000000e+00 : f32
    %15 = vector.broadcast %cst_11 : f32 to vector<16x128xf32>
    %16 = arith.maximumf %14, %15 : vector<16x128xf32>
    %17 = arith.truncf %16 : vector<16x128xf32> to vector<16x128xbf16>
    %c0_12 = arith.constant 0 : index
    %c0_13 = arith.constant 0 : index
    %18 = vector.load %arg6[%c0_12, %c0_13] : memref<128x128xbf16, #tpu.memory_space<vmem>>, vector<128x128xbf16>
    %cst_14 = arith.constant dense<0.000000e+00> : vector<16x128xf32>
    %19 = tpu.matmul %17, %18, %cst_14 {dimension_numbers = #tpu.dot_dimension_numbers<[1], [0], [0], [1], [0, 0, 1, 1], [], []>} : vector<16x128xbf16>, vector<128x128xbf16>, vector<16x128xf32> -> vector<16x128xf32>
    %c0_15 = arith.constant 0 : index
    %c0_16 = arith.constant 0 : index
    %20 = vector.load %arg7[%c0_15, %c0_16] : memref<1x128xf32, #tpu.memory_space<vmem>>, vector<1x128xf32>
    %21 = vector.broadcast %20 : vector<1x128xf32> to vector<16x128xf32>
    %22 = arith.addf %19, %21 : vector<16x128xf32>
    %cst_17 = arith.constant 0.000000e+00 : f32
    %23 = vector.broadcast %cst_17 : f32 to vector<16x128xf32>
    %24 = arith.maximumf %22, %23 : vector<16x128xf32>
    %c0_18 = arith.constant 0 : index
    %c0_19 = arith.constant 0 : index
    %25 = vector.load %arg8[%c0_18, %c0_19] : memref<1x128xf32, #tpu.memory_space<vmem>>, vector<1x128xf32>
    %26 = vector.broadcast %25 : vector<1x128xf32> to vector<16x128xf32>
    %27 = arith.mulf %24, %26 : vector<16x128xf32>
    %cst_20 = arith.constant dense<0.000000e+00> : vector<16xf32>
    %28 = vector.multi_reduction <add>, %27, %cst_20 [1] : vector<16x128xf32> to vector<16xf32>
    %29 = vector.shape_cast %28 : vector<16xf32> to vector<16x1xf32>
    %c0_21 = arith.constant 0 : index
    %c0_22 = arith.constant 0 : index
    %30 = memref.load %arg9[%c0_21, %c0_22] : memref<1x1xf32, #tpu.memory_space<smem>>
    %31 = vector.broadcast %30 : f32 to vector<16x1xf32>
    %32 = arith.addf %29, %31 : vector<16x1xf32>
    %c0_23 = arith.constant 0 : index
    %c0_24 = arith.constant 0 : index
    %33 = vector.load %arg10[%c0_23, %c0_24] : memref<16x1xf32, #tpu.memory_space<vmem>>, vector<16x1xf32>
    tpu.vector_store %arg10[%c0_23, %c0_24], %32 {strides = array<i32>} : memref<16x1xf32, #tpu.memory_space<vmem>>, vector<16x1xf32>,
    return
  }
  func.func @transform_0(%arg0: i32) -> (i32, i32) {
    %c0_i32 = arith.constant 0 : i32
    %c0_i32_0 = arith.constant 0 : i32
    return %arg0, %c0_i32 : i32, i32
  }
  func.func @transform_1(%arg0: i32) -> (i32, i32) {
    %c0_i32 = arith.constant 0 : i32
    %c0_i32_0 = arith.constant 0 : i32
    %c0_i32_1 = arith.constant 0 : i32
    return %c0_i32, %c0_i32_0 : i32, i32
  }
  func.func @transform_2(%arg0: i32) -> (i32, i32) {
    %c0_i32 = arith.constant 0 : i32
    %c0_i32_0 = arith.constant 0 : i32
    %c0_i32_1 = arith.constant 0 : i32
    return %c0_i32, %c0_i32_0 : i32, i32
  }
  func.func @transform_3(%arg0: i32) -> (i32, i32) {
    %c0_i32 = arith.constant 0 : i32
    %c0_i32_0 = arith.constant 0 : i32
    %c0_i32_1 = arith.constant 0 : i32
    return %c0_i32, %c0_i32_0 : i32, i32
  }
  func.func @transform_4(%arg0: i32) -> (i32, i32) {
    %c0_i32 = arith.constant 0 : i32
    %c0_i32_0 = arith.constant 0 : i32
    %c0_i32_1 = arith.constant 0 : i32
    return %c0_i32, %c0_i32_0 : i32, i32
  }
  func.func @transform_5(%arg0: i32) -> (i32, i32) {
    %c0_i32 = arith.constant 0 : i32
    %c0_i32_0 = arith.constant 0 : i32
    %c0_i32_1 = arith.constant 0 : i32
    return %c0_i32, %c0_i32_0 : i32, i32
  }
  func.func @transform_6(%arg0: i32) -> (i32, i32) {
    %c0_i32 = arith.constant 0 : i32
    %c0_i32_0 = arith.constant 0 : i32
    %c0_i32_1 = arith.constant 0 : i32
    return %c0_i32, %c0_i32_0 : i32, i32
  }
  func.func @transform_7(%arg0: i32) -> (i32, i32) {
    %c0_i32 = arith.constant 0 : i32
    %c0_i32_0 = arith.constant 0 : i32
    %c0_i32_1 = arith.constant 0 : i32
    return %c0_i32, %c0_i32_0 : i32, i32
  }
  func.func @transform_8(%arg0: i32) -> (i32, i32) {
    %c0_i32 = arith.constant 0 : i32
    %c0_i32_0 = arith.constant 0 : i32
    %c0_i32_1 = arith.constant 0 : i32
    return %c0_i32, %c0_i32_0 : i32, i32
  }
  func.func @transform_9(%arg0: i32) -> (i32, i32) {
    %c0_i32 = arith.constant 0 : i32
    %c0_i32_0 = arith.constant 0 : i32
    return %arg0, %c0_i32 : i32, i32
  }
}

</mosaic_0001>

<llo_original>
// kernel: mlp_forward.1
$region0: #{mlp_forward.1}
  #allocation0 [shape = 'u32[]', space=smem, size = 0x4, offset = 0x4, fixed_abs, tag = 'smem constant byte address 0x4 - core index']
  #allocation1 [shape = 'u32[144,128]{1,0:T(1,128)}', space=vmem, size = 0x12000, scoped, tag = 'internal scratch']
  #allocation2 [shape = 'f32[1,1]{1,0:T(1,128)S(6)}', space=smem, size = 0x200, scoped, tag = 'scoped memory for mlp_forward.1']
  %s0 = inlined_call_operand.vmem [shape: f32[16,32], index: 0, kind: input, shape index: {}]
  %s1 = inlined_call_operand.vmem [shape: bf16[32,128], index: 1, kind: input, shape index: {}]
  %s2 = inlined_call_operand.vmem [shape: f32[1,128], index: 2, kind: input, shape index: {}]
  %s3 = inlined_call_operand.vmem [shape: bf16[128,128], index: 3, kind: input, shape index: {}]
  %s4 = inlined_call_operand.vmem [shape: f32[1,128], index: 4, kind: input, shape index: {}]
  %s5 = inlined_call_operand.vmem [shape: bf16[128,128], index: 5, kind: input, shape index: {}]
  %s6 = inlined_call_operand.vmem [shape: f32[1,128], index: 6, kind: input, shape index: {}]
  %s7 = inlined_call_operand.vmem [shape: f32[1,128], index: 7, kind: input, shape index: {}]
  %s8 = inlined_call_operand.<no memory space> [shape: f32[1,1], index: 8, kind: input, shape index: {}]
  %s9 = inlined_call_operand.vmem [shape: f32[16,1], index: 9, kind: output, shape index: {}]
  %s10 = sld [smem:[#allocation0]]
  $region46: #{mlp_forward.1} parent=0
    _
  %s12 = ssub.s32 1, %s10
  %s13 = scalar_select 0, %s12, %s10
  %14 = sst [smem:[#allocation2]] %s8
  // Predicated region
  $region2: #{mlp_forward.1} parent=0 // pred_check
    _
  $region3: #{mlp_forward.1} parent=0 // pred_check_branch
    %16 = sbr.rel (0) target = $region5
  $region4: #{mlp_forward.1} parent=0 // pred_region
    _
  $region5: #{mlp_forward.1} parent=0 // pred_fallthru
    _
  // Predicated region
  $region6: #{mlp_forward.1} parent=0 // pred_check
    _
  $region7: #{mlp_forward.1} parent=0 // pred_check_branch
    %18 = sbr.rel (0) target = $region9
  $region8: #{mlp_forward.1} parent=0 // pred_region
    _
  $region9: #{mlp_forward.1} parent=0 // pred_fallthru
    _
  // Predicated region
  $region10: #{mlp_forward.1} parent=0 // pred_check
    _
  $region11: #{mlp_forward.1} parent=0 // pred_check_branch
    %20 = sbr.rel (0) target = $region13
  $region12: #{mlp_forward.1} parent=0 // pred_region
    _
  $region13: #{mlp_forward.1} parent=0 // pred_fallthru
    _
  // Predicated region
  $region14: #{mlp_forward.1} parent=0 // pred_check
    _
  $region15: #{mlp_forward.1} parent=0 // pred_check_branch
    %22 = sbr.rel (0) target = $region17
  $region16: #{mlp_forward.1} parent=0 // pred_region
    _
  $region17: #{mlp_forward.1} parent=0 // pred_fallthru
    _
  // Predicated region
  $region18: #{mlp_forward.1} parent=0 // pred_check
    _
  $region19: #{mlp_forward.1} parent=0 // pred_check_branch
    %24 = sbr.rel (0) target = $region21
  $region20: #{mlp_forward.1} parent=0 // pred_region
    _
  $region21: #{mlp_forward.1} parent=0 // pred_fallthru
    _
  // Predicated region
  $region22: #{mlp_forward.1} parent=0 // pred_check
    _
  $region23: #{mlp_forward.1} parent=0 // pred_check_branch
    %26 = sbr.rel (0) target = $region25
  $region24: #{mlp_forward.1} parent=0 // pred_region
    _
  $region25: #{mlp_forward.1} parent=0 // pred_fallthru
    _
  // Predicated region
  $region26: #{mlp_forward.1} parent=0 // pred_check
    _
  $region27: #{mlp_forward.1} parent=0 // pred_check_branch
    %28 = sbr.rel (0) target = $region29
  $region28: #{mlp_forward.1} parent=0 // pred_region
    _
  $region29: #{mlp_forward.1} parent=0 // pred_fallthru
    _
  // Predicated region
  $region30: #{mlp_forward.1} parent=0 // pred_check
    _
  $region31: #{mlp_forward.1} parent=0 // pred_check_branch
    %30 = sbr.rel (0) target = $region33
  $region32: #{mlp_forward.1} parent=0 // pred_region
    _
  $region33: #{mlp_forward.1} parent=0 // pred_fallthru
    _
  // Predicated region
  $region34: #{mlp_forward.1} parent=0 // pred_check
    _
  $region35: #{mlp_forward.1} parent=0 // pred_check_branch
    %32 = sbr.rel (0) target = $region37
  $region36: #{mlp_forward.1} parent=0 // pred_region
    _
  $region37: #{mlp_forward.1} parent=0 // pred_fallthru
    _
  %v34 = vld [vmem:[%s0] sm:$0xff]
  %v35 = vld [vmem:[%s0 + $0x8] sm:$0xff]
  %v36 = vpack.c.bf16 %v35, %v34
  %v37 = vld [vmem:[%s1] sm:$0xf]
  %v38 = vld [vmem:[%s1 + $0x4] sm:$0xf]
  %v39 = vld [vmem:[%s1 + $0x8] sm:$0xf]
  %v40 = vld [vmem:[%s1 + $0xc] sm:$0xf]
  %v41 = vld [vmem:[%s2] sm:$0x1]
  %v43 = vlaneseq
  %v44 = vshrl.u32 %v43, 7
  %v45 = vsub.s32 0, %v44
  %v46 = vrot.slane %v41, %v45
  %v52 = vunpack.c.l.b16 %v37
  %v53 = vunpack.c.l.b16 %v38
  %v54 = vunpack.c.l.b16 %v39
  %v55 = vunpack.c.l.b16 %v40
  %v56 = vpack.c.b16 %v53, %v52
  %v57 = vpack.c.b16 %v55, %v54
  %vm60 = vcmask 261120
  %v62 = vsel %vm60, %v36, 0
  %64 = vmatprep.subr.bf16.mxu0 0
  %65 = vmatpush1.bf16.msra.mxu0 %v56
  %66 = vmatprep.subr.bf16.mxu0 0
  %67 = vmatpush1.bf16.msra.mxu0 %v57
  %68 = vmatprep.subr.bf16.mxu0 0
  %69 = vmatpush1.bf16.msra.mxu0 0
  %70 = vmatprep.subr.bf16.mxu0 0
  %71 = vmatpush1.bf16.msra.mxu0 0
  %72 = vmatprep.subr.bf16.mxu0 0
  %73 = vmatpush1.bf16.msra.mxu0 0
  %74 = vmatprep.subr.bf16.mxu0 0
  %75 = vmatpush1.bf16.msra.mxu0 0
  %76 = vmatprep.subr.bf16.mxu0 0
  %77 = vmatpush1.bf16.msra.mxu0 0
  %78 = vmatprep.subr.bf16.mxu0 0
  %79 = vmatpush1.bf16.msra.mxu0 0
  %80 = vmatprep.subr.bf16.mxu0 0
  %81 = vmatpush1.bf16.msra.mxu0 0
  %82 = vmatprep.subr.bf16.mxu0 0
  %83 = vmatpush1.bf16.msra.mxu0 0
  %84 = vmatprep.subr.bf16.mxu0 0
  %85 = vmatpush1.bf16.msra.mxu0 0
  %86 = vmatprep.subr.bf16.mxu0 0
  %87 = vmatpush1.bf16.msra.mxu0 0
  %88 = vmatprep.subr.bf16.mxu0 0
  %89 = vmatpush1.bf16.msra.mxu0 0
  %90 = vmatprep.subr.bf16.mxu0 0
  %91 = vmatpush1.bf16.msra.mxu0 0
  %92 = vmatprep.subr.bf16.mxu0 0
  %93 = vmatpush1.bf16.msra.mxu0 0
  %94 = vmatprep.subr.bf16.mxu0 0
  %95 = vmatpush1.bf16.msra.mxu0 0
  %96 = vmatprep.mubr.bf16.mxu0 0
  %97 = vmatmul.mubr.bf16.gmra.mrb[0].mxu0 %v62
  %v98 = vpop.f32.mrb[0].mxu0
  %v99 = vadd.f32 %v46, %v98
  %v100 = vpop.f32.mrb[0].mxu0
  %v101 = vpop.f32.mrb[0].mxu0
  %v102 = vadd.f32 %v46, %v101
  %v103 = vpop.f32.mrb[0].mxu0
  %104 = vdwg.mxu0
  %v105 = vmax.f32 %v99, 0.0
  %v106 = vmax.f32 %v102, 0.0
  %v107 = vpack.c.bf16 %v106, %v105
  %v108 = vld [vmem:[%s3] sm:$0xf]
  %v109 = vld [vmem:[%s3 + $0x4] sm:$0xf]
  %v110 = vld [vmem:[%s3 + $0x8] sm:$0xf]
  %v111 = vld [vmem:[%s3 + $0xc] sm:$0xf]
  %v112 = vld [vmem:[%s3 + $0x10] sm:$0xf]
  %v113 = vld [vmem:[%s3 + $0x14] sm:$0xf]
  %v114 = vld [vmem:[%s3 + $0x18] sm:$0xf]
  %v115 = vld [vmem:[%s3 + $0x1c] sm:$0xf]
  %v116 = vld [vmem:[%s3 + $0x20] sm:$0xf]
  %v117 = vld [vmem:[%s3 + $0x24] sm:$0xf]
  %v118 = vld [vmem:[%s3 + $0x28] sm:$0xf]
  %v119 = vld [vmem:[%s3 + $0x2c] sm:$0xf]
  %v120 = vld [vmem:[%s3 + $0x30] sm:$0xf]
  %v121 = vld [vmem:[%s3 + $0x34] sm:$0xf]
  %v122 = vld [vmem:[%s3 + $0x38] sm:$0xf]
  %v123 = vld [vmem:[%s3 + $0x3c] sm:$0xf]
  %v124 = vld [vmem:[%s4] sm:$0x1]
  %v126 = vlaneseq
  %v127 = vshrl.u32 %v126, 7
  %v128 = vsub.s32 0, %v127
  %v129 = vrot.slane %v124, %v128
  %v147 = vunpack.c.l.b16 %v108
  %v148 = vunpack.c.l.b16 %v109
  %v149 = vunpack.c.l.b16 %v110
  %v150 = vunpack.c.l.b16 %v111
  %v151 = vunpack.c.l.b16 %v112
  %v152 = vunpack.c.l.b16 %v113
  %v153 = vunpack.c.l.b16 %v114
  %v154 = vunpack.c.l.b16 %v115
  %v155 = vunpack.c.l.b16 %v116
  %v156 = vunpack.c.l.b16 %v117
  %v157 = vunpack.c.l.b16 %v118
  %v158 = vunpack.c.l.b16 %v119
  %v159 = vunpack.c.l.b16 %v120
  %v160 = vunpack.c.l.b16 %v121
  %v161 = vunpack.c.l.b16 %v122
  %v162 = vunpack.c.l.b16 %v123
  %v163 = vpack.c.b16 %v148, %v147
  %v164 = vpack.c.b16 %v150, %v149
  %v165 = vpack.c.b16 %v152, %v151
  %v166 = vpack.c.b16 %v154, %v153
  %v167 = vpack.c.b16 %v156, %v155
  %v168 = vpack.c.b16 %v158, %v157
  %v169 = vpack.c.b16 %v160, %v159
  %v170 = vpack.c.b16 %v162, %v161
  %179 = vmatprep.subr.bf16.mxu0 0
  %180 = vmatpush1.bf16.msra.mxu0 %v163
  %181 = vmatprep.subr.bf16.mxu0 0
  %182 = vmatpush1.bf16.msra.mxu0 %v164
  %183 = vmatprep.subr.bf16.mxu0 0
  %184 = vmatpush1.bf16.msra.mxu0 %v165
  %185 = vmatprep.subr.bf16.mxu0 0
  %186 = vmatpush1.bf16.msra.mxu0 %v166
  %187 = vmatprep.subr.bf16.mxu0 0
  %188 = vmatpush1.bf16.msra.mxu0 %v167
  %189 = vmatprep.subr.bf16.mxu0 0
  %190 = vmatpush1.bf16.msra.mxu0 %v168
  %191 = vmatprep.subr.bf16.mxu0 0
  %192 = vmatpush1.bf16.msra.mxu0 %v169
  %193 = vmatprep.subr.bf16.mxu0 0
  %194 = vmatpush1.bf16.msra.mxu0 %v170
  %195 = vmatprep.subr.bf16.mxu0 0
  %196 = vmatpush1.bf16.msra.mxu0 0
  %197 = vmatprep.subr.bf16.mxu0 0
  %198 = vmatpush1.bf16.msra.mxu0 0
  %199 = vmatprep.subr.bf16.mxu0 0
  %200 = vmatpush1.bf16.msra.mxu0 0
  %201 = vmatprep.subr.bf16.mxu0 0
  %202 = vmatpush1.bf16.msra.mxu0 0
  %203 = vmatprep.subr.bf16.mxu0 0
  %204 = vmatpush1.bf16.msra.mxu0 0
  %205 = vmatprep.subr.bf16.mxu0 0
  %206 = vmatpush1.bf16.msra.mxu0 0
  %207 = vmatprep.subr.bf16.mxu0 0
  %208 = vmatpush1.bf16.msra.mxu0 0
  %209 = vmatprep.subr.bf16.mxu0 0
  %210 = vmatpush1.bf16.msra.mxu0 0
  %211 = vmatprep.mubr.bf16.mxu0 0
  %212 = vmatmul.mubr.bf16.gmra.mrb[0].mxu0 %v107
  %v213 = vpop.f32.mrb[0].mxu0
  %v214 = vadd.f32 %v129, %v213
  %v215 = vpop.f32.mrb[0].mxu0
  %v216 = vpop.f32.mrb[0].mxu0
  %v217 = vadd.f32 %v129, %v216
  %v218 = vpop.f32.mrb[0].mxu0
  %219 = vdwg.mxu0
  %v220 = vmax.f32 %v214, 0.0
  %v221 = vmax.f32 %v217, 0.0
  %v222 = vpack.c.bf16 %v221, %v220
  %v223 = vld [vmem:[%s5] sm:$0xf]
  %v224 = vld [vmem:[%s5 + $0x4] sm:$0xf]
  %v225 = vld [vmem:[%s5 + $0x8] sm:$0xf]
  %v226 = vld [vmem:[%s5 + $0xc] sm:$0xf]
  %v227 = vld [vmem:[%s5 + $0x10] sm:$0xf]
  %v228 = vld [vmem:[%s5 + $0x14] sm:$0xf]
  %v229 = vld [vmem:[%s5 + $0x18] sm:$0xf]
  %v230 = vld [vmem:[%s5 + $0x1c] sm:$0xf]
  %v231 = vld [vmem:[%s5 + $0x20] sm:$0xf]
  %v232 = vld [vmem:[%s5 + $0x24] sm:$0xf]
  %v233 = vld [vmem:[%s5 + $0x28] sm:$0xf]
  %v234 = vld [vmem:[%s5 + $0x2c] sm:$0xf]
  %v235 = vld [vmem:[%s5 + $0x30] sm:$0xf]
  %v236 = vld [vmem:[%s5 + $0x34] sm:$0xf]
  %v237 = vld [vmem:[%s5 + $0x38] sm:$0xf]
  %v238 = vld [vmem:[%s5 + $0x3c] sm:$0xf]
  %v239 = vld [vmem:[%s6] sm:$0x1]
  %v241 = vlaneseq
  %v242 = vshrl.u32 %v241, 7
  %v243 = vsub.s32 0, %v242
  %v244 = vrot.slane %v239, %v243
  %v262 = vunpack.c.l.b16 %v223
  %v263 = vunpack.c.l.b16 %v224
  %v264 = vunpack.c.l.b16 %v225
  %v265 = vunpack.c.l.b16 %v226
  %v266 = vunpack.c.l.b16 %v227
  %v267 = vunpack.c.l.b16 %v228
  %v268 = vunpack.c.l.b16 %v229
  %v269 = vunpack.c.l.b16 %v230
  %v270 = vunpack.c.l.b16 %v231
  %v271 = vunpack.c.l.b16 %v232
  %v272 = vunpack.c.l.b16 %v233
  %v273 = vunpack.c.l.b16 %v234
  %v274 = vunpack.c.l.b16 %v235
  %v275 = vunpack.c.l.b16 %v236
  %v276 = vunpack.c.l.b16 %v237
  %v277 = vunpack.c.l.b16 %v238
  %v278 = vpack.c.b16 %v263, %v262
  %v279 = vpack.c.b16 %v265, %v264
  %v280 = vpack.c.b16 %v267, %v266
  %v281 = vpack.c.b16 %v269, %v268
  %v282 = vpack.c.b16 %v271, %v270
  %v283 = vpack.c.b16 %v273, %v272
  %v284 = vpack.c.b16 %v275, %v274
  %v285 = vpack.c.b16 %v277, %v276
  %294 = vmatprep.subr.bf16.mxu0 0
  %295 = vmatpush1.bf16.msra.mxu0 %v278
  %296 = vmatprep.subr.bf16.mxu0 0
  %297 = vmatpush1.bf16.msra.mxu0 %v279
  %298 = vmatprep.subr.bf16.mxu0 0
  %299 = vmatpush1.bf16.msra.mxu0 %v280
  %300 = vmatprep.subr.bf16.mxu0 0
  %301 = vmatpush1.bf16.msra.mxu0 %v281
  %302 = vmatprep.subr.bf16.mxu0 0
  %303 = vmatpush1.bf16.msra.mxu0 %v282
  %304 = vmatprep.subr.bf16.mxu0 0
  %305 = vmatpush1.bf16.msra.mxu0 %v283
  %306 = vmatprep.subr.bf16.mxu0 0
  %307 = vmatpush1.bf16.msra.mxu0 %v284
  %308 = vmatprep.subr.bf16.mxu0 0
  %309 = vmatpush1.bf16.msra.mxu0 %v285
  %310 = vmatprep.subr.bf16.mxu0 0
  %311 = vmatpush1.bf16.msra.mxu0 0
  %312 = vmatprep.subr.bf16.mxu0 0
  %313 = vmatpush1.bf16.msra.mxu0 0
  %314 = vmatprep.subr.bf16.mxu0 0
  %315 = vmatpush1.bf16.msra.mxu0 0
  %316 = vmatprep.subr.bf16.mxu0 0
  %317 = vmatpush1.bf16.msra.mxu0 0
  %318 = vmatprep.subr.bf16.mxu0 0
  %319 = vmatpush1.bf16.msra.mxu0 0
  %320 = vmatprep.subr.bf16.mxu0 0
  %321 = vmatpush1.bf16.msra.mxu0 0
  %322 = vmatprep.subr.bf16.mxu0 0
  %323 = vmatpush1.bf16.msra.mxu0 0
  %324 = vmatprep.subr.bf16.mxu0 0
  %325 = vmatpush1.bf16.msra.mxu0 0
  %326 = vmatprep.mubr.bf16.mxu0 0
  %327 = vmatmul.mubr.bf16.gmra.mrb[0].mxu0 %v222
  %v328 = vpop.f32.mrb[0].mxu0
  %v329 = vadd.f32 %v244, %v328
  %v330 = vpop.f32.mrb[0].mxu0
  %v331 = vpop.f32.mrb[0].mxu0
  %v332 = vadd.f32 %v244, %v331
  %v333 = vpop.f32.mrb[0].mxu0
  %334 = vdwg.mxu0
  %v335 = vmax.f32 %v329, 0.0
  %v336 = vmax.f32 %v332, 0.0
  %v337 = vld [vmem:[%s7] sm:$0x1]
  %v339 = vlaneseq
  %v340 = vshrl.u32 %v339, 7
  %v341 = vsub.s32 0, %v340
  %v342 = vrot.slane %v337, %v341
  %v344 = vmul.f32 %v335, %v342
  %v345 = vmul.f32 %v336, %v342
  %346 = vadd.xlane.f32.xlu0 %v344
  %v347 = vpop.xlane.xlu0 %346
  %348 = vadd.xlane.f32.xlu0 %v345
  %v349 = vpop.xlane.xlu0 %348
  %s350 = sld [smem:[#allocation2]]
  %v351 = vstv %s350
  %v352 = vadd.f32 %v347, %v351
  %v353 = vadd.f32 %v349, %v351
  %vm354 = vcmask 7168
  %355 = vst.msk [vmem:[%s9] sm:$0xff] %vm354, %v352
  %356 = vst.msk [vmem:[%s9 + $0x8] sm:$0xff] %vm354, %v353
  // Predicated region
  $region38: #{mlp_forward.1} parent=0 // pred_check
    _
  $region39: #{mlp_forward.1} parent=0 // pred_check_branch
    %358 = sbr.rel (0) target = $region41
  $region40: #{mlp_forward.1} parent=0 // pred_region
    _
  $region41: #{mlp_forward.1} parent=0 // pred_fallthru
    _
  // Predicated region
  $region42: #{mlp_forward.1} parent=0 // pred_check
    _
  $region43: #{mlp_forward.1} parent=0 // pred_check_branch
    %360 = sbr.rel (0) target = $region45
  $region44: #{mlp_forward.1} parent=0 // pred_region
    _
  $region45: #{mlp_forward.1} parent=0 // pred_fallthru
    _

</llo_original>
